<compile_context>
chip_gen: v7x
topology: tpu7x:2x2x1
jax: 0.10.0
libtpu: 0.0.40
codegen_flags: <defaults>
</compile_context>

<pallas_src>
import jax
import jax.numpy as jnp
from jax.experimental import pallas as pl
from jax.experimental.pallas import tpu as pltpu


def critic_kernel(s_h_ref, s_ev_ref, wh_ref, wev_ref,
                  w1a_ref, w1b_ref, w2_ref, w3_ref, out_ref):
    # s_h_ref : [2, TB]   s_ev_ref : [4, TB]   (batch on the lane axis)
    # wh_ref  : [H/2, 2]  wev_ref  : [H/2, 4]
    # w1a_ref : [H, H/2]  w1b_ref  : [H, H/2]  w2_ref : [H, H]  w3_ref : [1, H]

    # --- feature_h_1: tanh(Wh @ s_h^T) as K=2 VPU broadcast FMAs (skip padded MXU dot)
    f_h_pre = wh_ref[:, 0:1] * s_h_ref[0:1, :] + wh_ref[:, 1:2] * s_h_ref[1:2, :]
    f_h = jnp.tanh(f_h_pre)                                         # [H/2, TB]

    # --- feature_eva_1: tanh(Wev @ s_ev^T) as K=4 VPU broadcast FMAs
    f_ev_pre = wev_ref[:, 0:1] * s_ev_ref[0:1, :]
    for k in range(1, 4):
        f_ev_pre = f_ev_pre + wev_ref[:, k:k + 1] * s_ev_ref[k:k + 1, :]
    f_ev = jnp.tanh(f_ev_pre)                                       # [H/2, TB]

    prod = f_h * f_ev                                               # [H/2, TB]

    # --- q1 head. Concat([f_ev, prod]) @ W1^T is done as two MXU dots (split W1),
    #     accumulating in f32; no concat / relayout in VMEM.
    h1_pre = (jnp.dot(w1a_ref[...], f_ev, preferred_element_type=jnp.float32)
              + jnp.dot(w1b_ref[...], prod, preferred_element_type=jnp.float32))
    h1 = jnp.abs(jnp.tanh(h1_pre))                                  # [H, TB]

    h2 = jnp.abs(jnp.tanh(
        jnp.dot(w2_ref[...], h1, preferred_element_type=jnp.float32)))  # [H, TB]

    # Final Linear(H -> 1): lane-dense [1, TB] output tile (unmasked stores).
    out_ref[...] = jnp.dot(w3_ref[...], h2, preferred_element_type=jnp.float32)


def critic_forward(s_h, s_ev, wh, wev, w1, w2, w3, *, tb=256):
    """s_h: [B, 2], s_ev: [B, 4]; weights in torch layout [out, in]. Returns [B, 1]."""
    B = s_h.shape[0]
    H = w1.shape[0]
    HALF = H // 2
    assert w1.shape == (H, H) and w2.shape == (H, H) and w3.shape == (1, H)
    assert wh.shape == (HALF, 2) and wev.shape == (HALF, 4)
    assert tb % 128 == 0, "tile must be lane-aligned"

    # Pad batch to a multiple of the tile and go feature-major (batch on lanes).
    n_blk = pl.cdiv(B, tb)
    Bp = n_blk * tb
    s_h_t = jnp.zeros((2, Bp), jnp.float32).at[:, :B].set(s_h.T.astype(jnp.float32))
    s_ev_t = jnp.zeros((4, Bp), jnp.float32).at[:, :B].set(s_ev.T.astype(jnp.float32))

    # Split W1 along its input dim so the in-kernel concat disappears.
    w1a = w1[:, :HALF]
    w1b = w1[:, HALF:]

    def resident(shape):
        # Whole (tiny) weight stays VMEM-resident across all grid steps.
        return pl.BlockSpec(shape, lambda i: (0, 0))

    out_t = pl.pallas_call(
        critic_kernel,
        out_shape=jax.ShapeDtypeStruct((1, Bp), jnp.float32),
        grid=(n_blk,),
        in_specs=[
            pl.BlockSpec((2, tb), lambda i: (0, i)),     # s_h^T   (pipelined over batch)
            pl.BlockSpec((4, tb), lambda i: (0, i)),     # s_ev^T
            resident((HALF, 2)),                         # Wh
            resident((HALF, 4)),                         # Wev
            resident((H, HALF)),                         # W1[:, :H/2]
            resident((H, HALF)),                         # W1[:, H/2:]
            resident((H, H)),                            # W2
            resident((1, H)),                            # W3
        ],
        out_specs=pl.BlockSpec((1, tb), lambda i: (0, i)),
        compiler_params=pltpu.CompilerParams(
            dimension_semantics=("parallel",)),          # megacore sharding on v7x
    )(s_h_t, s_ev_t, wh, wev, w1a, w1b, w2, w3)

    return out_t[:, :B].T                                # back to [B, 1]


def reference_forward(s_h, s_ev, wh, wev, w1, w2, w3):
    # Pure-JAX reference, batch-major, torch-layout weights ([out, in]).
    f_h = jnp.tanh(s_h @ wh.T)
    f_ev = jnp.tanh(s_ev @ wev.T)
    x = jnp.concatenate([f_ev, f_h * f_ev], axis=-1)
    h1 = jnp.abs(jnp.tanh(x @ w1.T))
    h2 = jnp.abs(jnp.tanh(h1 @ w2.T))
    return h2 @ w3.T


if __name__ == "__main__":
    HIDDEN = 32
    HALF = HIDDEN // 2

    key = jax.random.PRNGKey(0)
    k_wh, k_wev, k_w1, k_w2, k_w3 = jax.random.split(key, 5)

    # init_linear: normal(mean=0, std=0.01), no biases. Torch layout [out, in].
    wh = 0.01 * jax.random.normal(k_wh, (HALF, 2), dtype=jnp.float32)
    wev = 0.01 * jax.random.normal(k_wev, (HALF, 4), dtype=jnp.float32)
    w1 = 0.01 * jax.random.normal(k_w1, (HIDDEN, HIDDEN), dtype=jnp.float32)
    w2 = 0.01 * jax.random.normal(k_w2, (HIDDEN, HIDDEN), dtype=jnp.float32)
    w3 = 0.01 * jax.random.normal(k_w3, (1, HIDDEN), dtype=jnp.float32)

    # Two cases: tiny batch (single padded tile) and a batch that is not a tile
    # multiple (exercises the grid + tail-padding path).
    for B in (8, 777):
        k_sh, k_sev = jax.random.split(jax.random.fold_in(key, B))
        s_h = jax.random.normal(k_sh, (B, 2), dtype=jnp.float32)
        s_ev = jax.random.normal(k_sev, (B, 4), dtype=jnp.float32)

        out = critic_forward(s_h, s_ev, wh, wev, w1, w2, w3, tb=256)
        jax.block_until_ready(out)

        ref = reference_forward(s_h, s_ev, wh, wev, w1, w2, w3)
        assert out.shape == (B, 1)
        assert jnp.allclose(out, ref, atol=1e-5, rtol=1e-5), (
            B, float(jnp.max(jnp.abs(out - ref))))

    print("KERNEL_OK")
</pallas_src>

<mosaic_0001>
module attributes {stable_mosaic.version = 11 : i64} {
  func.func @critic_kernel(%arg0: i32, %arg1: memref<2x256xf32, #tpu.memory_space<vmem>>, %arg2: memref<4x256xf32, #tpu.memory_space<vmem>>, %arg3: memref<16x2xf32, #tpu.memory_space<vmem>>, %arg4: memref<16x4xf32, #tpu.memory_space<vmem>>, %arg5: memref<32x16xf32, #tpu.memory_space<vmem>>, %arg6: memref<32x16xf32, #tpu.memory_space<vmem>>, %arg7: memref<32x32xf32, #tpu.memory_space<vmem>>, %arg8: memref<1x32xf32, #tpu.memory_space<vmem>>, %arg9: memref<1x256xf32, #tpu.memory_space<vmem>>) attributes {dimension_semantics = [#tpu.dimension_semantics<parallel>], iteration_bounds = array<i64: 1>, scalar_prefetch = 0 : i64, scratch_operands = 0 : i64, tpu.core_type = #tpu.core_type<tc>, window_params = [{transform_indices = @transform_0, window_bounds = array<i64: 2, 256>}, {transform_indices = @transform_1, window_bounds = array<i64: 4, 256>}, {pipeline_mode = #tpu.pipeline_mode<synchronous>, transform_indices = @transform_2, window_bounds = array<i64: 16, 2>}, {pipeline_mode = #tpu.pipeline_mode<synchronous>, transform_indices = @transform_3, window_bounds = array<i64: 16, 4>}, {pipeline_mode = #tpu.pipeline_mode<synchronous>, transform_indices = @transform_4, window_bounds = array<i64: 32, 16>}, {pipeline_mode = #tpu.pipeline_mode<synchronous>, transform_indices = @transform_5, window_bounds = array<i64: 32, 16>}, {pipeline_mode = #tpu.pipeline_mode<synchronous>, transform_indices = @transform_6, window_bounds = array<i64: 32, 32>}, {pipeline_mode = #tpu.pipeline_mode<synchronous>, transform_indices = @transform_7, window_bounds = array<i64: 1, 32>}, {transform_indices = @transform_8, window_bounds = array<i64: 1, 256>}]} {
    %c0 = arith.constant 0 : index
    %c0_0 = arith.constant 0 : index
    %0 = vector.load %arg3[%c0, %c0_0] : memref<16x2xf32, #tpu.memory_space<vmem>>, vector<16x1xf32>
    %c0_1 = arith.constant 0 : index
    %c0_2 = arith.constant 0 : index
    %1 = vector.load %arg1[%c0_1, %c0_2] : memref<2x256xf32, #tpu.memory_space<vmem>>, vector<1x256xf32>
    %2 = vector.broadcast %0 : vector<16x1xf32> to vector<16x256xf32>
    %3 = vector.broadcast %1 : vector<1x256xf32> to vector<16x256xf32>
    %4 = arith.mulf %2, %3 : vector<16x256xf32>
    %c0_3 = arith.constant 0 : index
    %c1 = arith.constant 1 : index
    %5 = vector.load %arg3[%c0_3, %c1] : memref<16x2xf32, #tpu.memory_space<vmem>>, vector<16x1xf32>
    %c1_4 = arith.constant 1 : index
    %c0_5 = arith.constant 0 : index
    %6 = vector.load %arg1[%c1_4, %c0_5] : memref<2x256xf32, #tpu.memory_space<vmem>>, vector<1x256xf32>
    %7 = vector.broadcast %5 : vector<16x1xf32> to vector<16x256xf32>
    %8 = vector.broadcast %6 : vector<1x256xf32> to vector<16x256xf32>
    %9 = arith.mulf %7, %8 : vector<16x256xf32>
    %10 = arith.addf %4, %9 : vector<16x256xf32>
    %11 = math.tanh %10 : vector<16x256xf32>
    %c0_6 = arith.constant 0 : index
    %c0_7 = arith.constant 0 : index
    %12 = vector.load %arg4[%c0_6, %c0_7] : memref<16x4xf32, #tpu.memory_space<vmem>>, vector<16x1xf32>
    %c0_8 = arith.constant 0 : index
    %c0_9 = arith.constant 0 : index
    %13 = vector.load %arg2[%c0_8, %c0_9] : memref<4x256xf32, #tpu.memory_space<vmem>>, vector<1x256xf32>
    %14 = vector.broadcast %12 : vector<16x1xf32> to vector<16x256xf32>
    %15 = vector.broadcast %13 : vector<1x256xf32> to vector<16x256xf32>
    %16 = arith.mulf %14, %15 : vector<16x256xf32>
    %c0_10 = arith.constant 0 : index
    %c1_11 = arith.constant 1 : index
    %17 = vector.load %arg4[%c0_10, %c1_11] : memref<16x4xf32, #tpu.memory_space<vmem>>, vector<16x1xf32>
    %c1_12 = arith.constant 1 : index
    %c0_13 = arith.constant 0 : index
    %18 = vector.load %arg2[%c1_12, %c0_13] : memref<4x256xf32, #tpu.memory_space<vmem>>, vector<1x256xf32>
    %19 = vector.broadcast %17 : vector<16x1xf32> to vector<16x256xf32>
    %20 = vector.broadcast %18 : vector<1x256xf32> to vector<16x256xf32>
    %21 = arith.mulf %19, %20 : vector<16x256xf32>
    %22 = arith.addf %16, %21 : vector<16x256xf32>
    %c0_14 = arith.constant 0 : index
    %c2 = arith.constant 2 : index
    %23 = vector.load %arg4[%c0_14, %c2] : memref<16x4xf32, #tpu.memory_space<vmem>>, vector<16x1xf32>
    %c2_15 = arith.constant 2 : index
    %c0_16 = arith.constant 0 : index
    %24 = vector.load %arg2[%c2_15, %c0_16] : memref<4x256xf32, #tpu.memory_space<vmem>>, vector<1x256xf32>
    %25 = vector.broadcast %23 : vector<16x1xf32> to vector<16x256xf32>
    %26 = vector.broadcast %24 : vector<1x256xf32> to vector<16x256xf32>
    %27 = arith.mulf %25, %26 : vector<16x256xf32>
    %28 = arith.addf %22, %27 : vector<16x256xf32>
    %c0_17 = arith.constant 0 : index
    %c3 = arith.constant 3 : index
    %29 = vector.load %arg4[%c0_17, %c3] : memref<16x4xf32, #tpu.memory_space<vmem>>, vector<16x1xf32>
    %c3_18 = arith.constant 3 : index
    %c0_19 = arith.constant 0 : index
    %30 = vector.load %arg2[%c3_18, %c0_19] : memref<4x256xf32, #tpu.memory_space<vmem>>, vector<1x256xf32>
    %31 = vector.broadcast %29 : vector<16x1xf32> to vector<16x256xf32>
    %32 = vector.broadcast %30 : vector<1x256xf32> to vector<16x256xf32>
    %33 = arith.mulf %31, %32 : vector<16x256xf32>
    %34 = arith.addf %28, %33 : vector<16x256xf32>
    %35 = math.tanh %34 : vector<16x256xf32>
    %36 = arith.mulf %11, %35 : vector<16x256xf32>
    %c0_20 = arith.constant 0 : index
    %c0_21 = arith.constant 0 : index
    %37 = vector.load %arg5[%c0_20, %c0_21] : memref<32x16xf32, #tpu.memory_space<vmem>>, vector<32x16xf32>
    %cst = arith.constant dense<0.000000e+00> : vector<32x256xf32>
    %38 = tpu.matmul %37, %35, %cst {dimension_numbers = #tpu.dot_dimension_numbers<[1], [0], [0], [1], [0, 0, 1, 1], [], []>} : vector<32x16xf32>, vector<16x256xf32>, vector<32x256xf32> -> vector<32x256xf32>
    %c0_22 = arith.constant 0 : index
    %c0_23 = arith.constant 0 : index
    %39 = vector.load %arg6[%c0_22, %c0_23] : memref<32x16xf32, #tpu.memory_space<vmem>>, vector<32x16xf32>
    %cst_24 = arith.constant dense<0.000000e+00> : vector<32x256xf32>
    %40 = tpu.matmul %39, %36, %cst_24 {dimension_numbers = #tpu.dot_dimension_numbers<[1], [0], [0], [1], [0, 0, 1, 1], [], []>} : vector<32x16xf32>, vector<16x256xf32>, vector<32x256xf32> -> vector<32x256xf32>
    %41 = arith.addf %38, %40 : vector<32x256xf32>
    %42 = math.tanh %41 : vector<32x256xf32>
    %43 = math.absf %42 : vector<32x256xf32>
    %c0_25 = arith.constant 0 : index
    %c0_26 = arith.constant 0 : index
    %44 = vector.load %arg7[%c0_25, %c0_26] : memref<32x32xf32, #tpu.memory_space<vmem>>, vector<32x32xf32>
    %cst_27 = arith.constant dense<0.000000e+00> : vector<32x256xf32>
    %45 = tpu.matmul %44, %43, %cst_27 {dimension_numbers = #tpu.dot_dimension_numbers<[1], [0], [0], [1], [0, 0, 1, 1], [], []>} : vector<32x32xf32>, vector<32x256xf32>, vector<32x256xf32> -> vector<32x256xf32>
    %46 = math.tanh %45 : vector<32x256xf32>
    %47 = math.absf %46 : vector<32x256xf32>
    %c0_28 = arith.constant 0 : index
    %c0_29 = arith.constant 0 : index
    %48 = vector.load %arg8[%c0_28, %c0_29] : memref<1x32xf32, #tpu.memory_space<vmem>>, vector<1x32xf32>
    %cst_30 = arith.constant dense<0.000000e+00> : vector<1x256xf32>
    %49 = tpu.matmul %48, %47, %cst_30 {dimension_numbers = #tpu.dot_dimension_numbers<[1], [0], [0], [1], [0, 0, 1, 1], [], []>} : vector<1x32xf32>, vector<32x256xf32>, vector<1x256xf32> -> vector<1x256xf32>
    %c0_31 = arith.constant 0 : index
    %c0_32 = arith.constant 0 : index
    %50 = vector.load %arg9[%c0_31, %c0_32] : memref<1x256xf32, #tpu.memory_space<vmem>>, vector<1x256xf32>
    tpu.vector_store %arg9[%c0_31, %c0_32], %49 {strides = array<i32>} : memref<1x256xf32, #tpu.memory_space<vmem>>, vector<1x256xf32>,
    return
  }
  func.func @transform_0(%arg0: i32) -> (i32, i32) {
    %c0_i32 = arith.constant 0 : i32
    %c0_i32_0 = arith.constant 0 : i32
    return %c0_i32, %arg0 : i32, i32
  }
  func.func @transform_1(%arg0: i32) -> (i32, i32) {
    %c0_i32 = arith.constant 0 : i32
    %c0_i32_0 = arith.constant 0 : i32
    return %c0_i32, %arg0 : i32, i32
  }
  func.func @transform_2(%arg0: i32) -> (i32, i32) {
    %c0_i32 = arith.constant 0 : i32
    %c0_i32_0 = arith.constant 0 : i32
    %c0_i32_1 = arith.constant 0 : i32
    return %c0_i32, %c0_i32_0 : i32, i32
  }
  func.func @transform_3(%arg0: i32) -> (i32, i32) {
    %c0_i32 = arith.constant 0 : i32
    %c0_i32_0 = arith.constant 0 : i32
    %c0_i32_1 = arith.constant 0 : i32
    return %c0_i32, %c0_i32_0 : i32, i32
  }
  func.func @transform_4(%arg0: i32) -> (i32, i32) {
    %c0_i32 = arith.constant 0 : i32
    %c0_i32_0 = arith.constant 0 : i32
    %c0_i32_1 = arith.constant 0 : i32
    return %c0_i32, %c0_i32_0 : i32, i32
  }
  func.func @transform_5(%arg0: i32) -> (i32, i32) {
    %c0_i32 = arith.constant 0 : i32
    %c0_i32_0 = arith.constant 0 : i32
    %c0_i32_1 = arith.constant 0 : i32
    return %c0_i32, %c0_i32_0 : i32, i32
  }
  func.func @transform_6(%arg0: i32) -> (i32, i32) {
    %c0_i32 = arith.constant 0 : i32
    %c0_i32_0 = arith.constant 0 : i32
    %c0_i32_1 = arith.constant 0 : i32
    return %c0_i32, %c0_i32_0 : i32, i32
  }
  func.func @transform_7(%arg0: i32) -> (i32, i32) {
    %c0_i32 = arith.constant 0 : i32
    %c0_i32_0 = arith.constant 0 : i32
    %c0_i32_1 = arith.constant 0 : i32
    return %c0_i32, %c0_i32_0 : i32, i32
  }
  func.func @transform_8(%arg0: i32) -> (i32, i32) {
    %c0_i32 = arith.constant 0 : i32
    %c0_i32_0 = arith.constant 0 : i32
    return %c0_i32, %arg0 : i32, i32
  }
}

</mosaic_0001>

<llo_original>
// kernel: tpu_custom_call.1
$region0: #{tpu_custom_call.1}
  #allocation0 [shape = 'u32[]', space=smem, size = 0x4, offset = 0x4, fixed_abs, tag = 'smem constant byte address 0x4 - core index']
  #allocation1 [shape = 'u32[144,128]{1,0:T(1,128)}', space=vmem, size = 0x12000, scoped, tag = 'internal scratch']
  %s0 = inlined_call_operand.vmem [shape: f32[2,256], index: 0, kind: input, shape index: {}]
  %s1 = inlined_call_operand.vmem [shape: f32[4,256], index: 1, kind: input, shape index: {}]
  %s2 = inlined_call_operand.vmem [shape: f32[16,2], index: 2, kind: input, shape index: {}]
  %s3 = inlined_call_operand.vmem [shape: f32[16,4], index: 3, kind: input, shape index: {}]
  %s4 = inlined_call_operand.vmem [shape: f32[32,16], index: 4, kind: input, shape index: {}]
  %s5 = inlined_call_operand.vmem [shape: f32[32,16], index: 5, kind: input, shape index: {}]
  %s6 = inlined_call_operand.vmem [shape: f32[32,32], index: 6, kind: input, shape index: {}]
  %s7 = inlined_call_operand.vmem [shape: f32[1,32], index: 7, kind: input, shape index: {}]
  %s8 = inlined_call_operand.hbm [shape: f32[1,256], index: 8, kind: output, shape index: {}]
  %s9 = sld [smem:[#allocation0]]
  $region42: #{tpu_custom_call.1} parent=0
    _
  %s11 = ssub.s32 1, %s9
  %s12 = scalar_select 0, %s11, %s9
  $region1: #{tpu_custom_call.1} parent=0
    #allocation2 [shape = 'u8[1024]{0}', space=vmem, size = 0x400, scoped, tag = 'output window, operand 0, single buffered']
    #allocation3 [shape = 's32[1]{0}', space=sflag, size = 0x4, scoped, tag = 'scoped memory for tpu_custom_call.1']
    %13 = vsyncpa [#allocation3], 0
    // Predicated region
    $region2: #{tpu_custom_call.1} parent=1 // pred_check
      _
    $region3: #{tpu_custom_call.1} parent=1 // pred_check_branch
      %15 = sbr.rel (0) target = $region5
    $region4: #{tpu_custom_call.1} parent=1 // pred_region
      _
    $region5: #{tpu_custom_call.1} parent=1 // pred_fallthru
      _
    // Predicated region
    $region6: #{tpu_custom_call.1} parent=1 // pred_check
      _
    $region7: #{tpu_custom_call.1} parent=1 // pred_check_branch
      %17 = sbr.rel (0) target = $region9
    $region8: #{tpu_custom_call.1} parent=1 // pred_region
      _
    $region9: #{tpu_custom_call.1} parent=1 // pred_fallthru
      _
    // Predicated region
    $region10: #{tpu_custom_call.1} parent=1 // pred_check
      _
    $region11: #{tpu_custom_call.1} parent=1 // pred_check_branch
      %19 = sbr.rel (0) target = $region13
    $region12: #{tpu_custom_call.1} parent=1 // pred_region
      _
    $region13: #{tpu_custom_call.1} parent=1 // pred_fallthru
      _
    // Predicated region
    $region14: #{tpu_custom_call.1} parent=1 // pred_check
      _
    $region15: #{tpu_custom_call.1} parent=1 // pred_check_branch
      %21 = sbr.rel (0) target = $region17
    $region16: #{tpu_custom_call.1} parent=1 // pred_region
      _
    $region17: #{tpu_custom_call.1} parent=1 // pred_fallthru
      _
    // Predicated region
    $region18: #{tpu_custom_call.1} parent=1 // pred_check
      _
    $region19: #{tpu_custom_call.1} parent=1 // pred_check_branch
      %23 = sbr.rel (0) target = $region21
    $region20: #{tpu_custom_call.1} parent=1 // pred_region
      _
    $region21: #{tpu_custom_call.1} parent=1 // pred_fallthru
      _
    // Predicated region
    $region22: #{tpu_custom_call.1} parent=1 // pred_check
      _
    $region23: #{tpu_custom_call.1} parent=1 // pred_check_branch
      %25 = sbr.rel (0) target = $region25
    $region24: #{tpu_custom_call.1} parent=1 // pred_region
      _
    $region25: #{tpu_custom_call.1} parent=1 // pred_fallthru
      _
    // Predicated region
    $region26: #{tpu_custom_call.1} parent=1 // pred_check
      _
    $region27: #{tpu_custom_call.1} parent=1 // pred_check_branch
      %27 = sbr.rel (0) target = $region29
    $region28: #{tpu_custom_call.1} parent=1 // pred_region
      _
    $region29: #{tpu_custom_call.1} parent=1 // pred_fallthru
      _
    // Predicated region
    $region30: #{tpu_custom_call.1} parent=1 // pred_check
      _
    $region31: #{tpu_custom_call.1} parent=1 // pred_check_branch
      %29 = sbr.rel (0) target = $region33
    $region32: #{tpu_custom_call.1} parent=1 // pred_region
      _
    $region33: #{tpu_custom_call.1} parent=1 // pred_fallthru
      _
    %v30 = vld [vmem:[%s2] sm:$0xff]
    %v31 = vld [vmem:[%s2 + $0x8] sm:$0xff]
    %v32 = vld [vmem:[%s0] ss:$2 sm:$0x3]
    %34 = vset.pattern.permute.xlu0 0
    %35 = vperm.xlu0 %34, %v30
    %v36 = vpop.permute.xlu0 %35
    %39 = vset.pattern.permute.xlu0 0
    %40 = vperm.xlu0 %39, %v31
    %v41 = vpop.permute.xlu0 %40
    %v44 = vlaneseq
    %v45 = vshrl.u32 %v44, 7
    %v46 = vsub.s32 0, %v45
    %v47 = vrot.slane %v32, %v46
    %v48 = vlaneseq
    %v49 = vshrl.u32 %v48, 7
    %v50 = vsub.s32 1, %v49
    %v51 = vrot.slane %v32, %v50
    %v54 = vmul.f32 %v36, %v47
    %v55 = vmul.f32 %v36, %v51
    %v56 = vmul.f32 %v41, %v47
    %v57 = vmul.f32 %v41, %v51
    %s58 = scalar_lea.vmem %s0, 1
    %v59 = vld [vmem:[%s58] ss:$2 sm:$0x3]
    %60 = vset.pattern.permute.xlu0 1
    %61 = vperm.xlu0 %60, %v30
    %v62 = vpop.permute.xlu0 %61
    %64 = vset.pattern.permute.xlu0 1
    %65 = vperm.xlu0 %64, %v31
    %v66 = vpop.permute.xlu0 %65
    %v69 = vlaneseq
    %v70 = vshrl.u32 %v69, 7
    %v71 = vsub.s32 0, %v70
    %v72 = vrot.slane %v59, %v71
    %v73 = vlaneseq
    %v74 = vshrl.u32 %v73, 7
    %v75 = vsub.s32 1, %v74
    %v76 = vrot.slane %v59, %v75
    %v79 = vmul.f32 %v62, %v72
    %v80 = vmul.f32 %v62, %v76
    %v81 = vmul.f32 %v66, %v72
    %v82 = vmul.f32 %v66, %v76
    %v83 = vadd.f32 %v54, %v79
    %v84 = vadd.f32 %v55, %v80
    %v85 = vadd.f32 %v56, %v81
    %v86 = vadd.f32 %v57, %v82
    %v87 = vtanh.pop %v83
    %v88 = vtanh.pop %v84
    %v89 = vtanh.pop %v85
    %v90 = vtanh.pop %v86
    %v91 = vld [vmem:[%s3] sm:$0xff]
    %v92 = vld [vmem:[%s3 + $0x8] sm:$0xff]
    %v93 = vld [vmem:[%s1] ss:$4 sm:$0x3]
    %95 = vset.pattern.permute.xlu0 0
    %96 = vperm.xlu0 %95, %v91
    %v97 = vpop.permute.xlu0 %96
    %100 = vset.pattern.permute.xlu0 0
    %101 = vperm.xlu0 %100, %v92
    %v102 = vpop.permute.xlu0 %101
    %v105 = vlaneseq
    %v106 = vshrl.u32 %v105, 7
    %v107 = vsub.s32 0, %v106
    %v108 = vrot.slane %v93, %v107
    %v109 = vlaneseq
    %v110 = vshrl.u32 %v109, 7
    %v111 = vsub.s32 1, %v110
    %v112 = vrot.slane %v93, %v111
    %v115 = vmul.f32 %v97, %v108
    %v116 = vmul.f32 %v97, %v112
    %v117 = vmul.f32 %v102, %v108
    %v118 = vmul.f32 %v102, %v112
    %s119 = scalar_lea.vmem %s1, 1
    %v120 = vld [vmem:[%s119] ss:$4 sm:$0x3]
    %121 = vset.pattern.permute.xlu0 1
    %122 = vperm.xlu0 %121, %v91
    %v123 = vpop.permute.xlu0 %122
    %125 = vset.pattern.permute.xlu0 1
    %126 = vperm.xlu0 %125, %v92
    %v127 = vpop.permute.xlu0 %126
    %v130 = vlaneseq
    %v131 = vshrl.u32 %v130, 7
    %v132 = vsub.s32 0, %v131
    %v133 = vrot.slane %v120, %v132
    %v134 = vlaneseq
    %v135 = vshrl.u32 %v134, 7
    %v136 = vsub.s32 1, %v135
    %v137 = vrot.slane %v120, %v136
    %v140 = vmul.f32 %v123, %v133
    %v141 = vmul.f32 %v123, %v137
    %v142 = vmul.f32 %v127, %v133
    %v143 = vmul.f32 %v127, %v137
    %v144 = vadd.f32 %v115, %v140
    %v145 = vadd.f32 %v116, %v141
    %v146 = vadd.f32 %v117, %v142
    %v147 = vadd.f32 %v118, %v143
    %s148 = scalar_lea.vmem %s1, 2
    %v149 = vld [vmem:[%s148] ss:$4 sm:$0x3]
    %150 = vset.pattern.permute.xlu0 2
    %151 = vperm.xlu0 %150, %v91
    %v152 = vpop.permute.xlu0 %151
    %154 = vset.pattern.permute.xlu0 2
    %155 = vperm.xlu0 %154, %v92
    %v156 = vpop.permute.xlu0 %155
    %v159 = vlaneseq
    %v160 = vshrl.u32 %v159, 7
    %v161 = vsub.s32 0, %v160
    %v162 = vrot.slane %v149, %v161
    %v163 = vlaneseq
    %v164 = vshrl.u32 %v163, 7
    %v165 = vsub.s32 1, %v164
    %v166 = vrot.slane %v149, %v165
    %v169 = vmul.f32 %v152, %v162
    %v170 = vmul.f32 %v152, %v166
    %v171 = vmul.f32 %v156, %v162
    %v172 = vmul.f32 %v156, %v166
    %v173 = vadd.f32 %v144, %v169
    %v174 = vadd.f32 %v145, %v170
    %v175 = vadd.f32 %v146, %v171
    %v176 = vadd.f32 %v147, %v172
    %s177 = scalar_lea.vmem %s1, 3
    %v178 = vld [vmem:[%s177] ss:$4 sm:$0x3]
    %179 = vset.pattern.permute.xlu0 3
    %180 = vperm.xlu0 %179, %v91
    %v181 = vpop.permute.xlu0 %180
    %183 = vset.pattern.permute.xlu0 3
    %184 = vperm.xlu0 %183, %v92
    %v185 = vpop.permute.xlu0 %184
    %v188 = vlaneseq
    %v189 = vshrl.u32 %v188, 7
    %v190 = vsub.s32 0, %v189
    %v191 = vrot.slane %v178, %v190
    %v192 = vlaneseq
    %v193 = vshrl.u32 %v192, 7
    %v194 = vsub.s32 1, %v193
    %v195 = vrot.slane %v178, %v194
    %v198 = vmul.f32 %v181, %v191
    %v199 = vmul.f32 %v181, %v195
    %v200 = vmul.f32 %v185, %v191
    %v201 = vmul.f32 %v185, %v195
    %v202 = vadd.f32 %v173, %v198
    %v203 = vadd.f32 %v174, %v199
    %v204 = vadd.f32 %v175, %v200
    %v205 = vadd.f32 %v176, %v201
    %v206 = vtanh.pop %v202
    %v207 = vtanh.pop %v203
    %v208 = vtanh.pop %v204
    %v209 = vtanh.pop %v205
    %v210 = vmul.f32 %v87, %v206
    %v211 = vmul.f32 %v88, %v207
    %v212 = vmul.f32 %v89, %v208
    %v213 = vmul.f32 %v90, %v209
    %v214 = vld [vmem:[%s4] sm:$0xff]
    %v215 = vld [vmem:[%s4 + $0x8] sm:$0xff]
    %v216 = vld [vmem:[%s4 + $0x10] sm:$0xff]
    %v217 = vld [vmem:[%s4 + $0x18] sm:$0xff]
    %v218 = vld [vmem:[%s5] sm:$0xff]
    %v219 = vld [vmem:[%s5 + $0x8] sm:$0xff]
    %v220 = vld [vmem:[%s5 + $0x10] sm:$0xff]
    %v221 = vld [vmem:[%s5 + $0x18] sm:$0xff]
    %vm222 = vcmask 130048
    %v224 = vsel %vm222, %v218, 0
    %v227 = vsel %vm222, %v219, 0
    %v230 = vsel %vm222, %v220, 0
    %v233 = vsel %vm222, %v221, 0
    %235 = vmatprep.subr.mxu0 %v211
    %236 = vmatpush1.msra.mxu0 %v210
    %237 = vmatprep.subr.mxu0 %v213
    %238 = vmatpush1.msra.mxu0 %v212
    %239 = vmatprep.subr.mxu0 0.0
    %240 = vmatpush1.msra.mxu0 0.0
    %241 = vmatprep.subr.mxu0 0.0
    %242 = vmatpush1.msra.mxu0 0.0
    %243 = vmatprep.subr.mxu0 0.0
    %244 = vmatpush1.msra.mxu0 0.0
    %245 = vmatprep.subr.mxu0 0.0
    %246 = vmatpush1.msra.mxu0 0.0
    %247 = vmatprep.subr.mxu0 0.0
    %248 = vmatpush1.msra.mxu0 0.0
    %249 = vmatprep.subr.mxu0 0.0
    %250 = vmatpush1.msra.mxu0 0.0
    %251 = vmatprep.subr.mxu0 0.0
    %252 = vmatpush1.msra.mxu0 0.0
    %253 = vmatprep.subr.mxu0 0.0
    %254 = vmatpush1.msra.mxu0 0.0
    %255 = vmatprep.subr.mxu0 0.0
    %256 = vmatpush1.msra.mxu0 0.0
    %257 = vmatprep.subr.mxu0 0.0
    %258 = vmatpush1.msra.mxu0 0.0
    %259 = vmatprep.subr.mxu0 0.0
    %260 = vmatpush1.msra.mxu0 0.0
    %261 = vmatprep.subr.mxu0 0.0
    %262 = vmatpush1.msra.mxu0 0.0
    %263 = vmatprep.subr.mxu0 0.0
    %264 = vmatpush1.msra.mxu0 0.0
    %265 = vmatprep.subr.mxu0 0.0
    %266 = vmatpush1.msra.mxu0 0.0
    %267 = vmatprep.subr.mxu0 0.0
    %268 = vmatpush1.msra.mxu0 0.0
    %269 = vmatprep.subr.mxu0 0.0
    %270 = vmatpush1.msra.mxu0 0.0
    %271 = vmatprep.subr.mxu0 0.0
    %272 = vmatpush1.msra.mxu0 0.0
    %273 = vmatprep.subr.mxu0 0.0
    %274 = vmatpush1.msra.mxu0 0.0
    %275 = vmatprep.subr.mxu0 0.0
    %276 = vmatpush1.msra.mxu0 0.0
    %277 = vmatprep.subr.mxu0 0.0
    %278 = vmatpush1.msra.mxu0 0.0
    %279 = vmatprep.subr.mxu0 0.0
    %280 = vmatpush1.msra.mxu0 0.0
    %281 = vmatprep.subr.mxu0 0.0
    %282 = vmatpush1.msra.mxu0 0.0
    %283 = vmatprep.subr.mxu0 0.0
    %284 = vmatpush1.msra.mxu0 0.0
    %285 = vmatprep.subr.mxu0 0.0
    %286 = vmatpush1.msra.mxu0 0.0
    %287 = vmatprep.subr.mxu0 0.0
    %288 = vmatpush1.msra.mxu0 0.0
    %289 = vmatprep.subr.mxu0 0.0
    %290 = vmatpush1.msra.mxu0 0.0
    %291 = vmatprep.subr.mxu0 0.0
    %292 = vmatpush1.msra.mxu0 0.0
    %293 = vmatprep.subr.mxu0 0.0
    %294 = vmatpush1.msra.mxu0 0.0
    %295 = vmatprep.subr.mxu0 0.0
    %296 = vmatpush1.msra.mxu0 0.0
    %297 = vmatprep.subr.mxu0 0.0
    %298 = vmatpush1.msra.mxu0 0.0
    %299 = vmatprep.mubr.f32.mxu0 0.0
    %300 = vmatmul.mubr.f32.gmra.mrb[0].mxu0 %v224
    %v301 = vpop.f32.mrb[0].mxu0
    %v302 = vadd.f32 0.0, %v301
    %v303 = vpop.f32.mrb[0].mxu0
    %v304 = vadd.f32 0.0, %v303
    %305 = vmatprep.mubr.f32.mxu0 0.0
    %306 = vmatmul.mubr.f32.gmra.mrb[0].mxu0 %v227
    %v307 = vpop.f32.mrb[0].mxu0
    %v308 = vadd.f32 0.0, %v307
    %v309 = vpop.f32.mrb[0].mxu0
    %v310 = vadd.f32 0.0, %v309
    %311 = vmatprep.mubr.f32.mxu0 0.0
    %312 = vmatmul.mubr.f32.gmra.mrb[0].mxu0 %v230
    %v313 = vpop.f32.mrb[0].mxu0
    %v314 = vadd.f32 0.0, %v313
    %v315 = vpop.f32.mrb[0].mxu0
    %v316 = vadd.f32 0.0, %v315
    %317 = vmatprep.mubr.f32.mxu0 0.0
    %318 = vmatmul.mubr.f32.gmra.mrb[0].mxu0 %v233
    %v319 = vpop.f32.mrb[0].mxu0
    %v320 = vadd.f32 0.0, %v319
    %v321 = vpop.f32.mrb[0].mxu0
    %v322 = vadd.f32 0.0, %v321
    %323 = vdwg.mxu0
    %v325 = vsel %vm222, %v214, 0
    %v328 = vsel %vm222, %v215, 0
    %v331 = vsel %vm222, %v216, 0
    %v334 = vsel %vm222, %v217, 0
    %336 = vmatprep.subr.mxu0 %v207
    %337 = vmatpush1.msra.mxu0 %v206
    %338 = vmatprep.subr.mxu0 %v209
    %339 = vmatpush1.msra.mxu0 %v208
    %340 = vmatprep.subr.mxu0 0.0
    %341 = vmatpush1.msra.mxu0 0.0
    %342 = vmatprep.subr.mxu0 0.0
    %343 = vmatpush1.msra.mxu0 0.0
    %344 = vmatprep.subr.mxu0 0.0
    %345 = vmatpush1.msra.mxu0 0.0
    %346 = vmatprep.subr.mxu0 0.0
    %347 = vmatpush1.msra.mxu0 0.0
    %348 = vmatprep.subr.mxu0 0.0
    %349 = vmatpush1.msra.mxu0 0.0
    %350 = vmatprep.subr.mxu0 0.0
    %351 = vmatpush1.msra.mxu0 0.0
    %352 = vmatprep.subr.mxu0 0.0
    %353 = vmatpush1.msra.mxu0 0.0
    %354 = vmatprep.subr.mxu0 0.0
    %355 = vmatpush1.msra.mxu0 0.0
    %356 = vmatprep.subr.mxu0 0.0
    %357 = vmatpush1.msra.mxu0 0.0
    %358 = vmatprep.subr.mxu0 0.0
    %359 = vmatpush1.msra.mxu0 0.0
    %360 = vmatprep.subr.mxu0 0.0
    %361 = vmatpush1.msra.mxu0 0.0
    %362 = vmatprep.subr.mxu0 0.0
    %363 = vmatpush1.msra.mxu0 0.0
    %364 = vmatprep.subr.mxu0 0.0
    %365 = vmatpush1.msra.mxu0 0.0
    %366 = vmatprep.subr.mxu0 0.0
    %367 = vmatpush1.msra.mxu0 0.0
    %368 = vmatprep.subr.mxu0 0.0
    %369 = vmatpush1.msra.mxu0 0.0
    %370 = vmatprep.subr.mxu0 0.0
    %371 = vmatpush1.msra.mxu0 0.0
    %372 = vmatprep.subr.mxu0 0.0
    %373 = vmatpush1.msra.mxu0 0.0
    %374 = vmatprep.subr.mxu0 0.0
    %375 = vmatpush1.msra.mxu0 0.0
    %376 = vmatprep.subr.mxu0 0.0
    %377 = vmatpush1.msra.mxu0 0.0
    %378 = vmatprep.subr.mxu0 0.0
    %379 = vmatpush1.msra.mxu0 0.0
    %380 = vmatprep.subr.mxu0 0.0
    %381 = vmatpush1.msra.mxu0 0.0
    %382 = vmatprep.subr.mxu0 0.0
    %383 = vmatpush1.msra.mxu0 0.0
    %384 = vmatprep.subr.mxu0 0.0
    %385 = vmatpush1.msra.mxu0 0.0
    %386 = vmatprep.subr.mxu0 0.0
    %387 = vmatpush1.msra.mxu0 0.0
    %388 = vmatprep.subr.mxu0 0.0
    %389 = vmatpush1.msra.mxu0 0.0
    %390 = vmatprep.subr.mxu0 0.0
    %391 = vmatpush1.msra.mxu0 0.0
    %392 = vmatprep.subr.mxu0 0.0
    %393 = vmatpush1.msra.mxu0 0.0
    %394 = vmatprep.subr.mxu0 0.0
    %395 = vmatpush1.msra.mxu0 0.0
    %396 = vmatprep.subr.mxu0 0.0
    %397 = vmatpush1.msra.mxu0 0.0
    %398 = vmatprep.subr.mxu0 0.0
    %399 = vmatpush1.msra.mxu0 0.0
    %400 = vmatprep.mubr.f32.mxu0 0.0
    %401 = vmatmul.mubr.f32.gmra.mrb[0].mxu0 %v325
    %v402 = vpop.f32.mrb[0].mxu0
    %v403 = vadd.f32 %v302, %v402
    %v404 = vpop.f32.mrb[0].mxu0
    %v405 = vadd.f32 %v304, %v404
    %406 = vmatprep.mubr.f32.mxu0 0.0
    %407 = vmatmul.mubr.f32.gmra.mrb[0].mxu0 %v328
    %v408 = vpop.f32.mrb[0].mxu0
    %v409 = vadd.f32 %v308, %v408
    %v410 = vpop.f32.mrb[0].mxu0
    %v411 = vadd.f32 %v310, %v410
    %412 = vmatprep.mubr.f32.mxu0 0.0
    %413 = vmatmul.mubr.f32.gmra.mrb[0].mxu0 %v331
    %v414 = vpop.f32.mrb[0].mxu0
    %v415 = vadd.f32 %v314, %v414
    %v416 = vpop.f32.mrb[0].mxu0
    %v417 = vadd.f32 %v316, %v416
    %418 = vmatprep.mubr.f32.mxu0 0.0
    %419 = vmatmul.mubr.f32.gmra.mrb[0].mxu0 %v334
    %v420 = vpop.f32.mrb[0].mxu0
    %v421 = vadd.f32 %v320, %v420
    %v422 = vpop.f32.mrb[0].mxu0
    %v423 = vadd.f32 %v322, %v422
    %424 = vdwg.mxu0
    %v425 = vtanh.pop %v403
    %v426 = vtanh.pop %v405
    %v427 = vtanh.pop %v409
    %v428 = vtanh.pop %v411
    %v429 = vtanh.pop %v415
    %v430 = vtanh.pop %v417
    %v431 = vtanh.pop %v421
    %v432 = vtanh.pop %v423
    %v433 = vand.u32 2147483647, %v425
    %v434 = vand.u32 2147483647, %v426
    %v435 = vand.u32 2147483647, %v427
    %v436 = vand.u32 2147483647, %v428
    %v437 = vand.u32 2147483647, %v429
    %v438 = vand.u32 2147483647, %v430
    %v439 = vand.u32 2147483647, %v431
    %v440 = vand.u32 2147483647, %v432
    %v441 = vld [vmem:[%s6] sm:$0xff]
    %v442 = vld [vmem:[%s6 + $0x8] sm:$0xff]
    %v443 = vld [vmem:[%s6 + $0x10] sm:$0xff]
    %v444 = vld [vmem:[%s6 + $0x18] sm:$0xff]
    %vm445 = vcmask 261120
    %v447 = vsel %vm445, %v441, 0
    %v450 = vsel %vm445, %v442, 0
    %v453 = vsel %vm445, %v443, 0
    %v456 = vsel %vm445, %v444, 0
    %458 = vmatprep.subr.mxu0 %v434
    %459 = vmatpush1.msra.mxu0 %v433
    %460 = vmatprep.subr.mxu0 %v436
    %461 = vmatpush1.msra.mxu0 %v435
    %462 = vmatprep.subr.mxu0 %v438
    %463 = vmatpush1.msra.mxu0 %v437
    %464 = vmatprep.subr.mxu0 %v440
    %465 = vmatpush1.msra.mxu0 %v439
    %466 = vmatprep.subr.mxu0 0.0
    %467 = vmatpush1.msra.mxu0 0.0
    %468 = vmatprep.subr.mxu0 0.0
    %469 = vmatpush1.msra.mxu0 0.0
    %470 = vmatprep.subr.mxu0 0.0
    %471 = vmatpush1.msra.mxu0 0.0
    %472 = vmatprep.subr.mxu0 0.0
    %473 = vmatpush1.msra.mxu0 0.0
    %474 = vmatprep.subr.mxu0 0.0
    %475 = vmatpush1.msra.mxu0 0.0
    %476 = vmatprep.subr.mxu0 0.0
    %477 = vmatpush1.msra.mxu0 0.0
    %478 = vmatprep.subr.mxu0 0.0
    %479 = vmatpush1.msra.mxu0 0.0
    %480 = vmatprep.subr.mxu0 0.0
    %481 = vmatpush1.msra.mxu0 0.0
    %482 = vmatprep.subr.mxu0 0.0
    %483 = vmatpush1.msra.mxu0 0.0
    %484 = vmatprep.subr.mxu0 0.0
    %485 = vmatpush1.msra.mxu0 0.0
    %486 = vmatprep.subr.mxu0 0.0
    %487 = vmatpush1.msra.mxu0 0.0
    %488 = vmatprep.subr.mxu0 0.0
    %489 = vmatpush1.msra.mxu0 0.0
    %490 = vmatprep.subr.mxu0 0.0
    %491 = vmatpush1.msra.mxu0 0.0
    %492 = vmatprep.subr.mxu0 0.0
    %493 = vmatpush1.msra.mxu0 0.0
    %494 = vmatprep.subr.mxu0 0.0
    %495 = vmatpush1.msra.mxu0 0.0
    %496 = vmatprep.subr.mxu0 0.0
    %497 = vmatpush1.msra.mxu0 0.0
    %498 = vmatprep.subr.mxu0 0.0
    %499 = vmatpush1.msra.mxu0 0.0
    %500 = vmatprep.subr.mxu0 0.0
    %501 = vmatpush1.msra.mxu0 0.0
    %502 = vmatprep.subr.mxu0 0.0
    %503 = vmatpush1.msra.mxu0 0.0
    %504 = vmatprep.subr.mxu0 0.0
    %505 = vmatpush1.msra.mxu0 0.0
    %506 = vmatprep.subr.mxu0 0.0
    %507 = vmatpush1.msra.mxu0 0.0
    %508 = vmatprep.subr.mxu0 0.0
    %509 = vmatpush1.msra.mxu0 0.0
    %510 = vmatprep.subr.mxu0 0.0
    %511 = vmatpush1.msra.mxu0 0.0
    %512 = vmatprep.subr.mxu0 0.0
    %513 = vmatpush1.msra.mxu0 0.0
    %514 = vmatprep.subr.mxu0 0.0
    %515 = vmatpush1.msra.mxu0 0.0
    %516 = vmatprep.subr.mxu0 0.0
    %517 = vmatpush1.msra.mxu0 0.0
    %518 = vmatprep.subr.mxu0 0.0
    %519 = vmatpush1.msra.mxu0 0.0
    %520 = vmatprep.subr.mxu0 0.0
    %521 = vmatpush1.msra.mxu0 0.0
    %522 = vmatprep.mubr.f32.mxu0 0.0
    %523 = vmatmul.mubr.f32.gmra.mrb[0].mxu0 %v447
    %v524 = vpop.f32.mrb[0].mxu0
    %v525 = vadd.f32 0.0, %v524
    %v526 = vpop.f32.mrb[0].mxu0
    %v527 = vadd.f32 0.0, %v526
    %528 = vmatprep.mubr.f32.mxu0 0.0
    %529 = vmatmul.mubr.f32.gmra.mrb[0].mxu0 %v450
    %v530 = vpop.f32.mrb[0].mxu0
    %v531 = vadd.f32 0.0, %v530
    %v532 = vpop.f32.mrb[0].mxu0
    %v533 = vadd.f32 0.0, %v532
    %534 = vmatprep.mubr.f32.mxu0 0.0
    %535 = vmatmul.mubr.f32.gmra.mrb[0].mxu0 %v453
    %v536 = vpop.f32.mrb[0].mxu0
    %v537 = vadd.f32 0.0, %v536
    %v538 = vpop.f32.mrb[0].mxu0
    %v539 = vadd.f32 0.0, %v538
    %540 = vmatprep.mubr.f32.mxu0 0.0
    %541 = vmatmul.mubr.f32.gmra.mrb[0].mxu0 %v456
    %v542 = vpop.f32.mrb[0].mxu0
    %v543 = vadd.f32 0.0, %v542
    %v544 = vpop.f32.mrb[0].mxu0
    %v545 = vadd.f32 0.0, %v544
    %546 = vdwg.mxu0
    %v547 = vtanh.pop %v525
    %v548 = vtanh.pop %v527
    %v549 = vtanh.pop %v531
    %v550 = vtanh.pop %v533
    %v551 = vtanh.pop %v537
    %v552 = vtanh.pop %v539
    %v553 = vtanh.pop %v543
    %v554 = vtanh.pop %v545
    %v555 = vand.u32 2147483647, %v547
    %v556 = vand.u32 2147483647, %v548
    %v557 = vand.u32 2147483647, %v549
    %v558 = vand.u32 2147483647, %v550
    %v559 = vand.u32 2147483647, %v551
    %v560 = vand.u32 2147483647, %v552
    %v561 = vand.u32 2147483647, %v553
    %v562 = vand.u32 2147483647, %v554
    %v563 = vld [vmem:[%s7] sm:$0x1]
    %v565 = vsel %vm445, %v563, 0
    %567 = vmatprep.subr.mxu0 %v556
    %568 = vmatpush1.msra.mxu0 %v555
    %569 = vmatprep.subr.mxu0 %v558
    %570 = vmatpush1.msra.mxu0 %v557
    %571 = vmatprep.subr.mxu0 %v560
    %572 = vmatpush1.msra.mxu0 %v559
    %573 = vmatprep.subr.mxu0 %v562
    %574 = vmatpush1.msra.mxu0 %v561
    %575 = vmatprep.subr.mxu0 0.0
    %576 = vmatpush1.msra.mxu0 0.0
    %577 = vmatprep.subr.mxu0 0.0
    %578 = vmatpush1.msra.mxu0 0.0
    %579 = vmatprep.subr.mxu0 0.0
    %580 = vmatpush1.msra.mxu0 0.0
    %581 = vmatprep.subr.mxu0 0.0
    %582 = vmatpush1.msra.mxu0 0.0
    %583 = vmatprep.subr.mxu0 0.0
    %584 = vmatpush1.msra.mxu0 0.0
    %585 = vmatprep.subr.mxu0 0.0
    %586 = vmatpush1.msra.mxu0 0.0
    %587 = vmatprep.subr.mxu0 0.0
    %588 = vmatpush1.msra.mxu0 0.0
    %589 = vmatprep.subr.mxu0 0.0
    %590 = vmatpush1.msra.mxu0 0.0
    %591 = vmatprep.subr.mxu0 0.0
    %592 = vmatpush1.msra.mxu0 0.0
    %593 = vmatprep.subr.mxu0 0.0
    %594 = vmatpush1.msra.mxu0 0.0
    %595 = vmatprep.subr.mxu0 0.0
    %596 = vmatpush1.msra.mxu0 0.0
    %597 = vmatprep.subr.mxu0 0.0
    %598 = vmatpush1.msra.mxu0 0.0
    %599 = vmatprep.subr.mxu0 0.0
    %600 = vmatpush1.msra.mxu0 0.0
    %601 = vmatprep.subr.mxu0 0.0
    %602 = vmatpush1.msra.mxu0 0.0
    %603 = vmatprep.subr.mxu0 0.0
    %604 = vmatpush1.msra.mxu0 0.0
    %605 = vmatprep.subr.mxu0 0.0
    %606 = vmatpush1.msra.mxu0 0.0
    %607 = vmatprep.subr.mxu0 0.0
    %608 = vmatpush1.msra.mxu0 0.0
    %609 = vmatprep.subr.mxu0 0.0
    %610 = vmatpush1.msra.mxu0 0.0
    %611 = vmatprep.subr.mxu0 0.0
    %612 = vmatpush1.msra.mxu0 0.0
    %613 = vmatprep.subr.mxu0 0.0
    %614 = vmatpush1.msra.mxu0 0.0
    %615 = vmatprep.subr.mxu0 0.0
    %616 = vmatpush1.msra.mxu0 0.0
    %617 = vmatprep.subr.mxu0 0.0
    %618 = vmatpush1.msra.mxu0 0.0
    %619 = vmatprep.subr.mxu0 0.0
    %620 = vmatpush1.msra.mxu0 0.0
    %621 = vmatprep.subr.mxu0 0.0
    %622 = vmatpush1.msra.mxu0 0.0
    %623 = vmatprep.subr.mxu0 0.0
    %624 = vmatpush1.msra.mxu0 0.0
    %625 = vmatprep.subr.mxu0 0.0
    %626 = vmatpush1.msra.mxu0 0.0
    %627 = vmatprep.subr.mxu0 0.0
    %628 = vmatpush1.msra.mxu0 0.0
    %629 = vmatprep.subr.mxu0 0.0
    %630 = vmatpush1.msra.mxu0 0.0
    %631 = vmatprep.mubr.f32.mxu0 0.0
    %632 = vmatmul.mubr.f32.gmra.mrb[0].mxu0 %v565
    %v633 = vpop.f32.mrb[0].mxu0
    %v634 = vadd.f32 0.0, %v633
    %v635 = vpop.f32.mrb[0].mxu0
    %v636 = vadd.f32 0.0, %v635
    %637 = vdwg.mxu0
    %v640 = vcombine.low %v634, %v636
    %v642 = vunpack.c.l.s4 1966171168
    %v643 = vunpack.c.0.s8 %v642
    %v644 = vlaneseq
    %v645 = vshrl.u32 %v644, 7
    %v646 = vsub.s32 %v643, %v645
    %v647 = vrot.slane %v640, %v646
    %v649 = vunpack.c.l.s4 1966171168
    %v650 = vunpack.c.0.s8 %v649
    %v651 = vlaneseq
    %v652 = vshrl.u32 %v651, 7
    %v653 = vsub.s32 %v650, %v652
    %v654 = vrot.slane %v647, %v653
    %v656 = vlaneseq
    %vm657 = vcmp.ge.s32.totalorder %v656, 0
    %vm658 = vcmp.lt.s32.totalorder %v656, 256
    %vm659 = vmand %vm657, %vm658
    %660 = vst.msk [vmem:[#allocation2] sm:$0x3] %vm659, %v654
    // Predicated region
    $region34: #{tpu_custom_call.1} parent=1 // pred_check
      _
    $region35: #{tpu_custom_call.1} parent=1 // pred_check_branch
      %662 = sbr.rel (0) target = $region37
    $region36: #{tpu_custom_call.1} parent=1 // pred_region
      %s664 = ssub.s32 32, 32
      %665 = vsyncadd [#allocation3], %s664
      %s667 = sshll.u32 [#allocation2], 4
      %s668 = int_to_ptr.vmem [resolvable:$true] %s667
      %670 = dma.vmem_to_hbm [thread:$0]  %s668, 32, %s8, [#allocation3]
    $region37: #{tpu_custom_call.1} parent=1 // pred_fallthru
      _
    // Predicated region
    $region38: #{tpu_custom_call.1} parent=1 // pred_check
      _
    $region39: #{tpu_custom_call.1} parent=1 // pred_check_branch
      %672 = sbr.rel (0) target = $region41
    $region40: #{tpu_custom_call.1} parent=1 // pred_region
      %673 = dma.done [#allocation3], 32
    $region41: #{tpu_custom_call.1} parent=1 // pred_fallthru
      _
    %674 = vsyncpa [#allocation3], 1

</llo_original>
